<compile_context>
chip_gen: v7x
topology: tpu7x:2x2x1
jax: 0.10.0
libtpu: 0.0.40
codegen_flags: <defaults>
</compile_context>

<pallas_src>
import functools

import numpy as np
import jax
import jax.numpy as jnp
from jax.experimental import pallas as pl
from jax.experimental.pallas import tpu as pltpu


# --------------------- host-side bicubic-AA weight tables ---------------------
_CUBIC_A = -0.75  # torch's bicubic kernel coefficient


def _cubic(x):
    x = abs(float(x))
    if x < 1.0:
        return ((_CUBIC_A + 2.0) * x - (_CUBIC_A + 3.0)) * x * x + 1.0
    if x < 2.0:
        return (((x - 5.0) * x + 8.0) * x - 4.0) * _CUBIC_A
    return 0.0


def _bicubic_aa_matrix(in_size, out_size, align_corners=True):
    """(out_size, in_size) separable bicubic resize weights, antialiased.

    Follows torch's `_upsample_bicubic2d_aa` recipe: Keys cubic (a = -0.75),
    tap support widened by the scale factor when downscaling, taps normalized.
    Same-size resize reduces exactly to the identity matrix.
    """
    # TODO(synk): the exact tap-center convention torch uses for the
    # align_corners=True + antialias=True combination is not bit-verified here.
    if out_size > 1:
        scale = (in_size - 1) / (out_size - 1) if align_corners else in_size / out_size
    else:
        scale = 0.0
    support = 2.0 * scale if scale > 1.0 else 2.0
    invscale = 1.0 / scale if scale > 1.0 else 1.0
    mat = np.zeros((out_size, in_size), np.float64)
    for i in range(out_size):
        center = (scale * i + 0.5) if align_corners else scale * (i + 0.5)
        lo = max(int(center - support + 0.5), 0)
        hi = min(int(center + support + 0.5), in_size)
        w = np.array([_cubic((j + 0.5 - center) * invscale) for j in range(lo, hi)],
                     np.float64)
        s = w.sum()
        if s != 0.0:
            w /= s
        mat[i, lo:hi] = w
    return mat


# ------------------------------- Pallas kernel --------------------------------
def _pointwise_op_kernel(x_ref, wbd_ref, bias_ref, kt_ref, out_ref):
    """Fused 1x1 conv + bicubic-AA resize.

    x_ref    : (B*Ci, H*W)    input slab, batch folded into sublanes
    wbd_ref  : (B*Co, B*Ci)   block-diagonal conv weight  kron(I_B, W)
    bias_ref : (B*Co, 1)      per-row bias
    kt_ref   : (H*W, d1*d2)   transposed resize operator  kron(R, C)^T
    out_ref  : (B*Co, d1*d2)
    """
    x = x_ref[...]                                    # (rows_in, p_in), one load
    wbd = wbd_ref[...]                                # (rows_out, rows_in)
    rows_in, p_in = x.shape
    rows_out = out_ref.shape[0]

    # 1x1 conv as statically-unrolled VPU FMAs (no MXU for the tiny 8x8
    # contraction): each input row is broadcast across sublanes and scaled by
    # its lane-broadcast weight column.
    acc = jnp.zeros((rows_out, p_in), jnp.float32)
    for j in range(rows_in):                          # B*Ci = 8, static unroll
        acc = acc + x[j:j + 1, :] * wbd[:, j:j + 1]   # (1,p_in)*(rows_out,1)
    y = acc + bias_ref[...]                           # single bias broadcast

    # bicubic antialiased resize over the flattened grid: one MXU matmul with a
    # 256-deep contraction and a lane-dense (multiple of 128) output.
    out_ref[...] = jnp.dot(y, kt_ref[...], preferred_element_type=jnp.float32)


# --------------------------------- wrapper ------------------------------------
@functools.partial(jax.jit, static_argnames=("out_hw",))
def pointwise_op_2d(x, weight, bias, kt, *, out_hw):
    """x: (B, Ci, H, W) f32; weight: (Co, Ci); bias: (Co,);
    kt: (H*W, d1*d2) precomputed resize operator; returns (B, Co, d1, d2)."""
    b, ci, h, w = x.shape
    co = weight.shape[0]
    d1, d2 = out_hw
    p_in, p_out = h * w, d1 * d2

    x_flat = x.reshape(b * ci, p_in)                            # (8, 256) lane-dense
    wbd = jnp.kron(jnp.eye(b, dtype=weight.dtype), weight)      # (B*Co, B*Ci)
    bias_rows = jnp.tile(bias, b).reshape(b * co, 1)            # (B*Co, 1)

    cost = pl.CostEstimate(
        flops=2 * (b * co) * (b * ci) * p_in + 2 * (b * co) * p_in * p_out,
        transcendentals=0,
        bytes_accessed=4 * (x_flat.size + wbd.size + bias_rows.size
                            + kt.size + b * co * p_out),
    )

    out_flat = pl.pallas_call(
        _pointwise_op_kernel,
        out_shape=jax.ShapeDtypeStruct((b * co, p_out), jnp.float32),
        in_specs=[pl.BlockSpec(memory_space=pltpu.MemorySpace.VMEM)] * 4,
        out_specs=pl.BlockSpec(memory_space=pltpu.MemorySpace.VMEM),
        cost_estimate=cost,
    )(x_flat, wbd, bias_rows, kt)
    return out_flat.reshape(b, co, d1, d2)


# ----------------------------- pure-JAX reference -----------------------------
def reference_pointwise_op_2d(x, weight, bias, r_mat, c_mat):
    hp = jax.lax.Precision.HIGHEST
    y = jnp.einsum("oi,bihw->bohw", weight, x, precision=hp) \
        + bias[None, :, None, None]
    z = jnp.einsum("dh,bohw->bodw", r_mat, y, precision=hp)
    return jnp.einsum("ew,bodw->bode", c_mat, z, precision=hp)


# ----------------------------------- main --------------------------------------
if __name__ == "__main__":
    B, CI, CO = 2, 4, 4
    H, W = 16, 16            # input grid
    D1, D2 = 8, 32           # module default output grid (down in x, up in y); d1*d2 = 256

    key = jax.random.PRNGKey(0)
    kx, kw, kb = jax.random.split(key, 3)
    x = jax.random.normal(kx, (B, CI, H, W), jnp.float32)
    weight = 0.3 * jax.random.normal(kw, (CO, CI), jnp.float32)   # Conv2d 1x1 weight
    bias = 0.1 * jax.random.normal(kb, (CO,), jnp.float32)

    # ---- general resample path: (16,16) -> (8,32), antialias active along x ----
    R = _bicubic_aa_matrix(H, D1)                       # (D1, H)
    C = _bicubic_aa_matrix(W, D2)                       # (D2, W)
    kt = jnp.asarray(np.kron(R, C).T, jnp.float32)      # (H*W, D1*D2)

    out = jax.block_until_ready(pointwise_op_2d(x, weight, bias, kt, out_hw=(D1, D2)))
    ref = reference_pointwise_op_2d(x, weight, bias,
                                    jnp.asarray(R, jnp.float32),
                                    jnp.asarray(C, jnp.float32))
    assert out.shape == (B, CO, D1, D2)
    assert bool(jnp.all(jnp.isfinite(out)))
    assert jnp.allclose(out, ref, atol=1e-2, rtol=1e-2)

    # ---- same-grid path: (16,16) -> (16,16) is exactly the identity resize ----
    R2 = _bicubic_aa_matrix(H, H)
    C2 = _bicubic_aa_matrix(W, W)
    kt2 = jnp.asarray(np.kron(R2, C2).T, jnp.float32)
    out2 = jax.block_until_ready(pointwise_op_2d(x, weight, bias, kt2, out_hw=(H, W)))
    ref2 = reference_pointwise_op_2d(x, weight, bias,
                                     jnp.asarray(R2, jnp.float32),
                                     jnp.asarray(C2, jnp.float32))
    assert out2.shape == (B, CO, H, W)
    assert jnp.allclose(out2, ref2, atol=1e-2, rtol=1e-2)

    print("KERNEL_OK")
</pallas_src>

<mosaic_0001>
module attributes {stable_mosaic.version = 11 : i64} {
  func.func @_pointwise_op_kernel(%arg0: memref<8x256xf32, #tpu.memory_space<vmem>>, %arg1: memref<8x8xf32, #tpu.memory_space<vmem>>, %arg2: memref<8x1xf32, #tpu.memory_space<vmem>>, %arg3: memref<256x256xf32, #tpu.memory_space<vmem>>, %arg4: memref<8x256xf32, #tpu.memory_space<vmem>>) attributes {dimension_semantics = [], scalar_prefetch = 0 : i64, scratch_operands = 0 : i64, tpu.core_type = #tpu.core_type<tc>} {
    %c0 = arith.constant 0 : index
    %c0_0 = arith.constant 0 : index
    %0 = vector.load %arg0[%c0, %c0_0] : memref<8x256xf32, #tpu.memory_space<vmem>>, vector<8x256xf32>
    %c0_1 = arith.constant 0 : index
    %c0_2 = arith.constant 0 : index
    %1 = vector.load %arg1[%c0_1, %c0_2] : memref<8x8xf32, #tpu.memory_space<vmem>>, vector<8x8xf32>
    %cst = arith.constant 0.000000e+00 : f32
    %2 = vector.broadcast %cst : f32 to vector<8x256xf32>
    %3 = vector.extract_strided_slice %0 {offsets = [0, 0], sizes = [1, 256], strides = [1, 1]} : vector<8x256xf32> to vector<1x256xf32>
    %4 = vector.extract_strided_slice %1 {offsets = [0, 0], sizes = [8, 1], strides = [1, 1]} : vector<8x8xf32> to vector<8x1xf32>
    %5 = vector.broadcast %3 : vector<1x256xf32> to vector<8x256xf32>
    %6 = vector.broadcast %4 : vector<8x1xf32> to vector<8x256xf32>
    %7 = arith.mulf %5, %6 : vector<8x256xf32>
    %8 = arith.addf %2, %7 : vector<8x256xf32>
    %9 = vector.extract_strided_slice %0 {offsets = [1, 0], sizes = [1, 256], strides = [1, 1]} : vector<8x256xf32> to vector<1x256xf32>
    %10 = vector.extract_strided_slice %1 {offsets = [0, 1], sizes = [8, 1], strides = [1, 1]} : vector<8x8xf32> to vector<8x1xf32>
    %11 = vector.broadcast %9 : vector<1x256xf32> to vector<8x256xf32>
    %12 = vector.broadcast %10 : vector<8x1xf32> to vector<8x256xf32>
    %13 = arith.mulf %11, %12 : vector<8x256xf32>
    %14 = arith.addf %8, %13 : vector<8x256xf32>
    %15 = vector.extract_strided_slice %0 {offsets = [2, 0], sizes = [1, 256], strides = [1, 1]} : vector<8x256xf32> to vector<1x256xf32>
    %16 = vector.extract_strided_slice %1 {offsets = [0, 2], sizes = [8, 1], strides = [1, 1]} : vector<8x8xf32> to vector<8x1xf32>
    %17 = vector.broadcast %15 : vector<1x256xf32> to vector<8x256xf32>
    %18 = vector.broadcast %16 : vector<8x1xf32> to vector<8x256xf32>
    %19 = arith.mulf %17, %18 : vector<8x256xf32>
    %20 = arith.addf %14, %19 : vector<8x256xf32>
    %21 = vector.extract_strided_slice %0 {offsets = [3, 0], sizes = [1, 256], strides = [1, 1]} : vector<8x256xf32> to vector<1x256xf32>
    %22 = vector.extract_strided_slice %1 {offsets = [0, 3], sizes = [8, 1], strides = [1, 1]} : vector<8x8xf32> to vector<8x1xf32>
    %23 = vector.broadcast %21 : vector<1x256xf32> to vector<8x256xf32>
    %24 = vector.broadcast %22 : vector<8x1xf32> to vector<8x256xf32>
    %25 = arith.mulf %23, %24 : vector<8x256xf32>
    %26 = arith.addf %20, %25 : vector<8x256xf32>
    %27 = vector.extract_strided_slice %0 {offsets = [4, 0], sizes = [1, 256], strides = [1, 1]} : vector<8x256xf32> to vector<1x256xf32>
    %28 = vector.extract_strided_slice %1 {offsets = [0, 4], sizes = [8, 1], strides = [1, 1]} : vector<8x8xf32> to vector<8x1xf32>
    %29 = vector.broadcast %27 : vector<1x256xf32> to vector<8x256xf32>
    %30 = vector.broadcast %28 : vector<8x1xf32> to vector<8x256xf32>
    %31 = arith.mulf %29, %30 : vector<8x256xf32>
    %32 = arith.addf %26, %31 : vector<8x256xf32>
    %33 = vector.extract_strided_slice %0 {offsets = [5, 0], sizes = [1, 256], strides = [1, 1]} : vector<8x256xf32> to vector<1x256xf32>
    %34 = vector.extract_strided_slice %1 {offsets = [0, 5], sizes = [8, 1], strides = [1, 1]} : vector<8x8xf32> to vector<8x1xf32>
    %35 = vector.broadcast %33 : vector<1x256xf32> to vector<8x256xf32>
    %36 = vector.broadcast %34 : vector<8x1xf32> to vector<8x256xf32>
    %37 = arith.mulf %35, %36 : vector<8x256xf32>
    %38 = arith.addf %32, %37 : vector<8x256xf32>
    %39 = vector.extract_strided_slice %0 {offsets = [6, 0], sizes = [1, 256], strides = [1, 1]} : vector<8x256xf32> to vector<1x256xf32>
    %40 = vector.extract_strided_slice %1 {offsets = [0, 6], sizes = [8, 1], strides = [1, 1]} : vector<8x8xf32> to vector<8x1xf32>
    %41 = vector.broadcast %39 : vector<1x256xf32> to vector<8x256xf32>
    %42 = vector.broadcast %40 : vector<8x1xf32> to vector<8x256xf32>
    %43 = arith.mulf %41, %42 : vector<8x256xf32>
    %44 = arith.addf %38, %43 : vector<8x256xf32>
    %45 = vector.extract_strided_slice %0 {offsets = [7, 0], sizes = [1, 256], strides = [1, 1]} : vector<8x256xf32> to vector<1x256xf32>
    %46 = vector.extract_strided_slice %1 {offsets = [0, 7], sizes = [8, 1], strides = [1, 1]} : vector<8x8xf32> to vector<8x1xf32>
    %47 = vector.broadcast %45 : vector<1x256xf32> to vector<8x256xf32>
    %48 = vector.broadcast %46 : vector<8x1xf32> to vector<8x256xf32>
    %49 = arith.mulf %47, %48 : vector<8x256xf32>
    %50 = arith.addf %44, %49 : vector<8x256xf32>
    %c0_3 = arith.constant 0 : index
    %c0_4 = arith.constant 0 : index
    %51 = vector.load %arg2[%c0_3, %c0_4] : memref<8x1xf32, #tpu.memory_space<vmem>>, vector<8x1xf32>
    %52 = vector.broadcast %51 : vector<8x1xf32> to vector<8x256xf32>
    %53 = arith.addf %50, %52 : vector<8x256xf32>
    %c0_5 = arith.constant 0 : index
    %c0_6 = arith.constant 0 : index
    %54 = vector.load %arg3[%c0_5, %c0_6] : memref<256x256xf32, #tpu.memory_space<vmem>>, vector<256x256xf32>
    %cst_7 = arith.constant dense<0.000000e+00> : vector<8x256xf32>
    %55 = tpu.matmul %53, %54, %cst_7 {dimension_numbers = #tpu.dot_dimension_numbers<[1], [0], [0], [1], [0, 0, 1, 1], [], []>} : vector<8x256xf32>, vector<256x256xf32>, vector<8x256xf32> -> vector<8x256xf32>
    %c0_8 = arith.constant 0 : index
    %c0_9 = arith.constant 0 : index
    %56 = vector.load %arg4[%c0_8, %c0_9] : memref<8x256xf32, #tpu.memory_space<vmem>>, vector<8x256xf32>
    tpu.vector_store %arg4[%c0_8, %c0_9], %55 {strides = array<i32>} : memref<8x256xf32, #tpu.memory_space<vmem>>, vector<8x256xf32>,
    return
  }
}

</mosaic_0001>

<llo_original>
// kernel: tile.8
$region0: #{tile.8}
  #allocation0 [shape = 's32[1]{0}', space=sflag, size = 0x4, scoped, tag = 'scoped memory for tile.8']
  %s0 = inlined_call_operand.vmem [shape: f32[4], index: 0, kind: input, shape index: {}]
  %s1 = inlined_call_operand.vmem [shape: f32[2,4], index: 1, kind: output, shape index: {}]
  // Predicated region
  $region2: #{tile.8} parent=0 // pred_check
    _
  $region3: #{tile.8} parent=0 // pred_check_branch
    %3 = sbr.rel (0) target = $region5
  $region4: #{tile.8} parent=0 // pred_region
    _
  $region5: #{tile.8} parent=0 // pred_fallthru
    _
  %v4 = vld [vmem:[%s0] ss:$0 sm:$0xff]
  %5 = vst [vmem:[%s1] sm:$0x3] %v4

// kernel: tile.0
$region0: #{tile.0}
  %s0 = inlined_call_operand.vmem [shape: f32[2,4], index: 0, kind: input, shape index: {}]
  %s1 = inlined_call_operand.vmem [shape: f32[8,1], index: 1, kind: output, shape index: {}]
  $region1: #{tile.0} parent=0
    #allocation0 [shape = 'u8[4096]{0}', space=vmem, size = 0x1000, scoped, tag = 'scoped mem for input reshape']
    %s3 = sshllo.u32 0, 2
    %v4 = vld [vmem:[%s0] sm:%s3]
    %5 = vst [vmem:[#allocation0] sm:%s3] %v4
    %v6 = vld [vmem:[#allocation0] sm:$0x3]
    %vm7 = vcmask 7168
    %8 = vst.msk [vmem:[%s1] ss:$4 sm:$0x3] %vm7, %v6
    %v9 = vld [vmem:[#allocation0] sm:$0x3]
    %10 = vrot.lane.b32.xlu0 %v9, 127
    %v11 = vpop.permute.xlu0 %10
    %vm12 = vcmask 7168
    %s13 = scalar_lea.vmem %s1, 1
    %14 = vst.msk [vmem:[%s13] ss:$4 sm:$0x3] %vm12, %v11
    %v15 = vld [vmem:[#allocation0] sm:$0x3]
    %16 = vrot.lane.b32.xlu0 %v15, 126
    %v17 = vpop.permute.xlu0 %16
    %vm18 = vcmask 7168
    %s19 = scalar_lea.vmem %s1, 2
    %20 = vst.msk [vmem:[%s19] ss:$4 sm:$0x3] %vm18, %v17
    %v21 = vld [vmem:[#allocation0] sm:$0x3]
    %22 = vrot.lane.b32.xlu0 %v21, 125
    %v23 = vpop.permute.xlu0 %22
    %vm24 = vcmask 7168
    %s25 = scalar_lea.vmem %s1, 3
    %26 = vst.msk [vmem:[%s25] ss:$4 sm:$0x3] %vm24, %v23

// kernel: pointwise_op_2d.1
$region0: #{pointwise_op_2d.1}
  #allocation0 [shape = 'u32[]', space=smem, size = 0x4, offset = 0x4, fixed_abs, tag = 'smem constant byte address 0x4 - core index']
  #allocation1 [shape = 'u32[144,128]{1,0:T(1,128)}', space=vmem, size = 0x12000, scoped, tag = 'internal scratch']
  %s0 = inlined_call_operand.vmem [shape: f32[8,256], index: 0, kind: input, shape index: {}]
  %s1 = inlined_call_operand.vmem [shape: f32[8,8], index: 1, kind: input, shape index: {}]
  %s2 = inlined_call_operand.vmem [shape: f32[8,1], index: 2, kind: input, shape index: {}]
  %s3 = inlined_call_operand.hbm [shape: f32[256,256], index: 3, kind: input, shape index: {}]
  %s4 = inlined_call_operand.vmem [shape: f32[8,256], index: 4, kind: output, shape index: {}]
  %s5 = sld [smem:[#allocation0]]
  $region30: #{pointwise_op_2d.1} parent=0
    _
  %s7 = ssub.s32 1, %s5
  %s8 = scalar_select 0, %s7, %s5
  $region1: #{pointwise_op_2d.1} parent=0
    #allocation2 [shape = 'u8[262144]{0}', space=vmem, size = 0x40000, scoped, tag = 'input window, operand 3, single buffered']
    #allocation3 [shape = 's32[1]{0}', space=sflag, size = 0x4, scoped, tag = 'scoped memory for pointwise_op_2d.1']
    %9 = vsyncpa [#allocation3], 0
    // Predicated region
    $region2: #{pointwise_op_2d.1} parent=1 // pred_check
      _
    $region3: #{pointwise_op_2d.1} parent=1 // pred_check_branch
      %11 = sbr.rel (0) target = $region5
    $region4: #{pointwise_op_2d.1} parent=1 // pred_region
      _
    $region5: #{pointwise_op_2d.1} parent=1 // pred_fallthru
      _
    // Predicated region
    $region6: #{pointwise_op_2d.1} parent=1 // pred_check
      _
    $region7: #{pointwise_op_2d.1} parent=1 // pred_check_branch
      %13 = sbr.rel (0) target = $region9
    $region8: #{pointwise_op_2d.1} parent=1 // pred_region
      _
    $region9: #{pointwise_op_2d.1} parent=1 // pred_fallthru
      _
    // Predicated region
    $region10: #{pointwise_op_2d.1} parent=1 // pred_check
      _
    $region11: #{pointwise_op_2d.1} parent=1 // pred_check_branch
      %15 = sbr.rel (0) target = $region13
    $region12: #{pointwise_op_2d.1} parent=1 // pred_region
      _
    $region13: #{pointwise_op_2d.1} parent=1 // pred_fallthru
      _
    // Predicated region
    $region14: #{pointwise_op_2d.1} parent=1 // pred_check
      _
    $region15: #{pointwise_op_2d.1} parent=1 // pred_check_branch
      %17 = sbr.rel (0) target = $region17
    $region16: #{pointwise_op_2d.1} parent=1 // pred_region
      %s19 = ssub.s32 8192, 8192
      %20 = vsyncadd [#allocation3], %s19
      %s21 = sshll.u32 [#allocation2], 4
      %s22 = int_to_ptr.vmem [resolvable:$true] %s21
      %27 = dma.hbm_to_vmem [thread:$0]  %s3, 8192, %s22, [#allocation3], 256, 256, 16
    $region17: #{pointwise_op_2d.1} parent=1 // pred_fallthru
      _
    // Predicated region
    $region18: #{pointwise_op_2d.1} parent=1 // pred_check
      _
    $region19: #{pointwise_op_2d.1} parent=1 // pred_check_branch
      %29 = sbr.rel (0) target = $region21
    $region20: #{pointwise_op_2d.1} parent=1 // pred_region
      %30 = dma.done [#allocation3], 8192
    $region21: #{pointwise_op_2d.1} parent=1 // pred_fallthru
      _
    %v31 = vld [vmem:[%s0] sm:$0xff]
    %v32 = vld [vmem:[%s0 + $0x8] sm:$0xff]
    %v33 = vld [vmem:[%s1] sm:$0xff]
    %v34 = vlaneseq
    %v35 = vshrl.u32 %v34, 7
    %v36 = vsub.s32 0, %v35
    %v37 = vrot.slane %v31, %v36
    %v38 = vlaneseq
    %v39 = vshrl.u32 %v38, 7
    %v40 = vsub.s32 0, %v39
    %v41 = vrot.slane %v32, %v40
    %43 = vset.pattern.permute.xlu0 0
    %44 = vperm.xlu0 %43, %v33
    %v45 = vpop.permute.xlu0 %44
    %v47 = vmul.f32 %v37, %v45
    %v48 = vmul.f32 %v41, %v45
    %v49 = vadd.f32 %v47, 0.0
    %v50 = vadd.f32 %v48, 0.0
    %v51 = vlaneseq
    %v52 = vshrl.u32 %v51, 7
    %v53 = vsub.s32 1, %v52
    %v54 = vrot.slane %v31, %v53
    %v55 = vlaneseq
    %v56 = vshrl.u32 %v55, 7
    %v57 = vsub.s32 1, %v56
    %v58 = vrot.slane %v32, %v57
    %59 = vset.pattern.permute.xlu0 1
    %60 = vperm.xlu0 %59, %v33
    %v61 = vpop.permute.xlu0 %60
    %v63 = vmul.f32 %v54, %v61
    %v64 = vmul.f32 %v58, %v61
    %v65 = vadd.f32 %v49, %v63
    %v66 = vadd.f32 %v50, %v64
    %v67 = vlaneseq
    %v68 = vshrl.u32 %v67, 7
    %v69 = vsub.s32 2, %v68
    %v70 = vrot.slane %v31, %v69
    %v71 = vlaneseq
    %v72 = vshrl.u32 %v71, 7
    %v73 = vsub.s32 2, %v72
    %v74 = vrot.slane %v32, %v73
    %75 = vset.pattern.permute.xlu0 2
    %76 = vperm.xlu0 %75, %v33
    %v77 = vpop.permute.xlu0 %76
    %v79 = vmul.f32 %v70, %v77
    %v80 = vmul.f32 %v74, %v77
    %v81 = vadd.f32 %v65, %v79
    %v82 = vadd.f32 %v66, %v80
    %v83 = vlaneseq
    %v84 = vshrl.u32 %v83, 7
    %v85 = vsub.s32 3, %v84
    %v86 = vrot.slane %v31, %v85
    %v87 = vlaneseq
    %v88 = vshrl.u32 %v87, 7
    %v89 = vsub.s32 3, %v88
    %v90 = vrot.slane %v32, %v89
    %91 = vset.pattern.permute.xlu0 3
    %92 = vperm.xlu0 %91, %v33
    %v93 = vpop.permute.xlu0 %92
    %v95 = vmul.f32 %v86, %v93
    %v96 = vmul.f32 %v90, %v93
    %v97 = vadd.f32 %v81, %v95
    %v98 = vadd.f32 %v82, %v96
    %v99 = vlaneseq
    %v100 = vshrl.u32 %v99, 7
    %v101 = vsub.s32 4, %v100
    %v102 = vrot.slane %v31, %v101
    %v103 = vlaneseq
    %v104 = vshrl.u32 %v103, 7
    %v105 = vsub.s32 4, %v104
    %v106 = vrot.slane %v32, %v105
    %107 = vset.pattern.permute.xlu0 4
    %108 = vperm.xlu0 %107, %v33
    %v109 = vpop.permute.xlu0 %108
    %v111 = vmul.f32 %v102, %v109
    %v112 = vmul.f32 %v106, %v109
    %v113 = vadd.f32 %v97, %v111
    %v114 = vadd.f32 %v98, %v112
    %v115 = vlaneseq
    %v116 = vshrl.u32 %v115, 7
    %v117 = vsub.s32 5, %v116
    %v118 = vrot.slane %v31, %v117
    %v119 = vlaneseq
    %v120 = vshrl.u32 %v119, 7
    %v121 = vsub.s32 5, %v120
    %v122 = vrot.slane %v32, %v121
    %123 = vset.pattern.permute.xlu0 5
    %124 = vperm.xlu0 %123, %v33
    %v125 = vpop.permute.xlu0 %124
    %v127 = vmul.f32 %v118, %v125
    %v128 = vmul.f32 %v122, %v125
    %v129 = vadd.f32 %v113, %v127
    %v130 = vadd.f32 %v114, %v128
    %v131 = vlaneseq
    %v132 = vshrl.u32 %v131, 7
    %v133 = vsub.s32 6, %v132
    %v134 = vrot.slane %v31, %v133
    %v135 = vlaneseq
    %v136 = vshrl.u32 %v135, 7
    %v137 = vsub.s32 6, %v136
    %v138 = vrot.slane %v32, %v137
    %139 = vset.pattern.permute.xlu0 6
    %140 = vperm.xlu0 %139, %v33
    %v141 = vpop.permute.xlu0 %140
    %v143 = vmul.f32 %v134, %v141
    %v144 = vmul.f32 %v138, %v141
    %v145 = vadd.f32 %v129, %v143
    %v146 = vadd.f32 %v130, %v144
    %v147 = vlaneseq
    %v148 = vshrl.u32 %v147, 7
    %v149 = vsub.s32 7, %v148
    %v150 = vrot.slane %v31, %v149
    %v151 = vlaneseq
    %v152 = vshrl.u32 %v151, 7
    %v153 = vsub.s32 7, %v152
    %v154 = vrot.slane %v32, %v153
    %155 = vset.pattern.permute.xlu0 7
    %156 = vperm.xlu0 %155, %v33
    %v157 = vpop.permute.xlu0 %156
    %v159 = vmul.f32 %v150, %v157
    %v160 = vmul.f32 %v154, %v157
    %v161 = vadd.f32 %v145, %v159
    %v162 = vadd.f32 %v146, %v160
    %v163 = vld [vmem:[%s2] sm:$0xff]
    %165 = vset.pattern.permute.xlu0 0
    %166 = vperm.xlu0 %165, %v163
    %v167 = vpop.permute.xlu0 %166
    %v169 = vadd.f32 %v161, %v167
    %v170 = vadd.f32 %v162, %v167
    %v171 = vld [vmem:[#allocation2] sm:$0xff]
    %v172 = vld [vmem:[#allocation2 + $0x8] sm:$0xff]
    %v173 = vld [vmem:[#allocation2 + $0x10] sm:$0xff]
    %v174 = vld [vmem:[#allocation2 + $0x18] sm:$0xff]
    %v175 = vld [vmem:[#allocation2 + $0x20] sm:$0xff]
    %v176 = vld [vmem:[#allocation2 + $0x28] sm:$0xff]
    %v177 = vld [vmem:[#allocation2 + $0x30] sm:$0xff]
    %v178 = vld [vmem:[#allocation2 + $0x38] sm:$0xff]
    %v179 = vld [vmem:[#allocation2 + $0x40] sm:$0xff]
    %v180 = vld [vmem:[#allocation2 + $0x48] sm:$0xff]
    %v181 = vld [vmem:[#allocation2 + $0x50] sm:$0xff]
    %v182 = vld [vmem:[#allocation2 + $0x58] sm:$0xff]
    %v183 = vld [vmem:[#allocation2 + $0x60] sm:$0xff]
    %v184 = vld [vmem:[#allocation2 + $0x68] sm:$0xff]
    %v185 = vld [vmem:[#allocation2 + $0x70] sm:$0xff]
    %v186 = vld [vmem:[#allocation2 + $0x78] sm:$0xff]
    %v187 = vld [vmem:[#allocation2 + $0x80] sm:$0xff]
    %v188 = vld [vmem:[#allocation2 + $0x88] sm:$0xff]
    %v189 = vld [vmem:[#allocation2 + $0x90] sm:$0xff]
    %v190 = vld [vmem:[#allocation2 + $0x98] sm:$0xff]
    %v191 = vld [vmem:[#allocation2 + $0xa0] sm:$0xff]
    %v192 = vld [vmem:[#allocation2 + $0xa8] sm:$0xff]
    %v193 = vld [vmem:[#allocation2 + $0xb0] sm:$0xff]
    %v194 = vld [vmem:[#allocation2 + $0xb8] sm:$0xff]
    %v195 = vld [vmem:[#allocation2 + $0xc0] sm:$0xff]
    %v196 = vld [vmem:[#allocation2 + $0xc8] sm:$0xff]
    %v197 = vld [vmem:[#allocation2 + $0xd0] sm:$0xff]
    %v198 = vld [vmem:[#allocation2 + $0xd8] sm:$0xff]
    %v199 = vld [vmem:[#allocation2 + $0xe0] sm:$0xff]
    %v200 = vld [vmem:[#allocation2 + $0xe8] sm:$0xff]
    %v201 = vld [vmem:[#allocation2 + $0xf0] sm:$0xff]
    %v202 = vld [vmem:[#allocation2 + $0xf8] sm:$0xff]
    %v203 = vld [vmem:[#allocation2 + $0x100] sm:$0xff]
    %v204 = vld [vmem:[#allocation2 + $0x108] sm:$0xff]
    %v205 = vld [vmem:[#allocation2 + $0x110] sm:$0xff]
    %v206 = vld [vmem:[#allocation2 + $0x118] sm:$0xff]
    %v207 = vld [vmem:[#allocation2 + $0x120] sm:$0xff]
    %v208 = vld [vmem:[#allocation2 + $0x128] sm:$0xff]
    %v209 = vld [vmem:[#allocation2 + $0x130] sm:$0xff]
    %v210 = vld [vmem:[#allocation2 + $0x138] sm:$0xff]
    %v211 = vld [vmem:[#allocation2 + $0x140] sm:$0xff]
    %v212 = vld [vmem:[#allocation2 + $0x148] sm:$0xff]
    %v213 = vld [vmem:[#allocation2 + $0x150] sm:$0xff]
    %v214 = vld [vmem:[#allocation2 + $0x158] sm:$0xff]
    %v215 = vld [vmem:[#allocation2 + $0x160] sm:$0xff]
    %v216 = vld [vmem:[#allocation2 + $0x168] sm:$0xff]
    %v217 = vld [vmem:[#allocation2 + $0x170] sm:$0xff]
    %v218 = vld [vmem:[#allocation2 + $0x178] sm:$0xff]
    %v219 = vld [vmem:[#allocation2 + $0x180] sm:$0xff]
    %v220 = vld [vmem:[#allocation2 + $0x188] sm:$0xff]
    %v221 = vld [vmem:[#allocation2 + $0x190] sm:$0xff]
    %v222 = vld [vmem:[#allocation2 + $0x198] sm:$0xff]
    %v223 = vld [vmem:[#allocation2 + $0x1a0] sm:$0xff]
    %v224 = vld [vmem:[#allocation2 + $0x1a8] sm:$0xff]
    %v225 = vld [vmem:[#allocation2 + $0x1b0] sm:$0xff]
    %v226 = vld [vmem:[#allocation2 + $0x1b8] sm:$0xff]
    %v227 = vld [vmem:[#allocation2 + $0x1c0] sm:$0xff]
    %v228 = vld [vmem:[#allocation2 + $0x1c8] sm:$0xff]
    %v229 = vld [vmem:[#allocation2 + $0x1d0] sm:$0xff]
    %v230 = vld [vmem:[#allocation2 + $0x1d8] sm:$0xff]
    %v231 = vld [vmem:[#allocation2 + $0x1e0] sm:$0xff]
    %v232 = vld [vmem:[#allocation2 + $0x1e8] sm:$0xff]
    %v233 = vld [vmem:[#allocation2 + $0x1f0] sm:$0xff]
    %v234 = vld [vmem:[#allocation2 + $0x1f8] sm:$0xff]
    %235 = vmatprep.subr.mxu0 %v172
    %236 = vmatpush1.msra.mxu0 %v171
    %237 = vmatprep.subr.mxu0 %v174
    %238 = vmatpush1.msra.mxu0 %v173
    %239 = vmatprep.subr.mxu0 %v176
    %240 = vmatpush1.msra.mxu0 %v175
    %241 = vmatprep.subr.mxu0 %v178
    %242 = vmatpush1.msra.mxu0 %v177
    %243 = vmatprep.subr.mxu0 %v180
    %244 = vmatpush1.msra.mxu0 %v179
    %245 = vmatprep.subr.mxu0 %v182
    %246 = vmatpush1.msra.mxu0 %v181
    %247 = vmatprep.subr.mxu0 %v184
    %248 = vmatpush1.msra.mxu0 %v183
    %249 = vmatprep.subr.mxu0 %v186
    %250 = vmatpush1.msra.mxu0 %v185
    %251 = vmatprep.subr.mxu0 %v188
    %252 = vmatpush1.msra.mxu0 %v187
    %253 = vmatprep.subr.mxu0 %v190
    %254 = vmatpush1.msra.mxu0 %v189
    %255 = vmatprep.subr.mxu0 %v192
    %256 = vmatpush1.msra.mxu0 %v191
    %257 = vmatprep.subr.mxu0 %v194
    %258 = vmatpush1.msra.mxu0 %v193
    %259 = vmatprep.subr.mxu0 %v196
    %260 = vmatpush1.msra.mxu0 %v195
    %261 = vmatprep.subr.mxu0 %v198
    %262 = vmatpush1.msra.mxu0 %v197
    %263 = vmatprep.subr.mxu0 %v200
    %264 = vmatpush1.msra.mxu0 %v199
    %265 = vmatprep.subr.mxu0 %v202
    %266 = vmatpush1.msra.mxu0 %v201
    %267 = vmatprep.subr.mxu0 %v204
    %268 = vmatpush1.msra.mxu0 %v203
    %269 = vmatprep.subr.mxu0 %v206
    %270 = vmatpush1.msra.mxu0 %v205
    %271 = vmatprep.subr.mxu0 %v208
    %272 = vmatpush1.msra.mxu0 %v207
    %273 = vmatprep.subr.mxu0 %v210
    %274 = vmatpush1.msra.mxu0 %v209
    %275 = vmatprep.subr.mxu0 %v212
    %276 = vmatpush1.msra.mxu0 %v211
    %277 = vmatprep.subr.mxu0 %v214
    %278 = vmatpush1.msra.mxu0 %v213
    %279 = vmatprep.subr.mxu0 %v216
    %280 = vmatpush1.msra.mxu0 %v215
    %281 = vmatprep.subr.mxu0 %v218
    %282 = vmatpush1.msra.mxu0 %v217
    %283 = vmatprep.subr.mxu0 %v220
    %284 = vmatpush1.msra.mxu0 %v219
    %285 = vmatprep.subr.mxu0 %v222
    %286 = vmatpush1.msra.mxu0 %v221
    %287 = vmatprep.subr.mxu0 %v224
    %288 = vmatpush1.msra.mxu0 %v223
    %289 = vmatprep.subr.mxu0 %v226
    %290 = vmatpush1.msra.mxu0 %v225
    %291 = vmatprep.subr.mxu0 %v228
    %292 = vmatpush1.msra.mxu0 %v227
    %293 = vmatprep.subr.mxu0 %v230
    %294 = vmatpush1.msra.mxu0 %v229
    %295 = vmatprep.subr.mxu0 %v232
    %296 = vmatpush1.msra.mxu0 %v231
    %297 = vmatprep.subr.mxu0 %v234
    %298 = vmatpush1.msra.mxu0 %v233
    %299 = vmatprep.mubr.f32.mxu0 %v170
    %300 = vmatmul.mubr.f32.gmra.mrb[0].mxu0 %v169
    %v301 = vpop.f32.mrb[0].mxu0
    %v302 = vadd.f32 0.0, %v301
    %v303 = vpop.f32.mrb[0].mxu0
    %v304 = vadd.f32 0.0, %v303
    %305 = vdwg.mxu0
    %306 = vst [vmem:[%s4] sm:$0xff] %v302
    %307 = vst [vmem:[%s4 + $0x8] sm:$0xff] %v304
    // Predicated region
    $region22: #{pointwise_op_2d.1} parent=1 // pred_check
      _
    $region23: #{pointwise_op_2d.1} parent=1 // pred_check_branch
      %309 = sbr.rel (0) target = $region25
    $region24: #{pointwise_op_2d.1} parent=1 // pred_region
      _
    $region25: #{pointwise_op_2d.1} parent=1 // pred_fallthru
      _
    // Predicated region
    $region26: #{pointwise_op_2d.1} parent=1 // pred_check
      _
    $region27: #{pointwise_op_2d.1} parent=1 // pred_check_branch
      %311 = sbr.rel (0) target = $region29
    $region28: #{pointwise_op_2d.1} parent=1 // pred_region
      _
    $region29: #{pointwise_op_2d.1} parent=1 // pred_fallthru
      _
    %312 = vsyncpa [#allocation3], 1

</llo_original>
